<compile_context>
chip_gen: v5e
topology: v5e:2x2
jax: 0.10.0
libtpu: 0.0.40
codegen_flags: <defaults>
</compile_context>

<pallas_src>
import functools
import math

import jax
import jax.numpy as jnp
from jax import lax
from jax.experimental import pallas as pl
from jax.experimental.pallas import tpu as pltpu


def bilinear_convtranspose_weight(in_channels, out_channels, kernel_size=4):
    """Replicates FixedDeconv._init_weights / get_bilinear_kernel.

    PyTorch's weight.data.copy_ broadcasts the (Cin, 1, K, K) bilinear kernel over Cout,
    so every (ci, co) pair holds the same filter (ConvTranspose2d layout: Cin, Cout, K, K).
    """
    factor = (kernel_size + 1) // 2
    if kernel_size % 2 == 1:
        center = float(factor - 1)
    else:
        center = factor - 0.5
    og0 = jnp.arange(kernel_size, dtype=jnp.float32).reshape(-1, 1)
    og1 = jnp.arange(kernel_size, dtype=jnp.float32).reshape(1, -1)
    filt = (1.0 - jnp.abs(og0 - center) / factor) * (1.0 - jnp.abs(og1 - center) / factor)
    return jnp.broadcast_to(filt, (in_channels, out_channels, kernel_size, kernel_size))


def _grouped_parity_weight(w_ct):
    """Fold the (Cin, Cout, 4, 4) transpose-conv weight into 3 per-sy matrices.

    Returns (3, 4*Cout, 3*Cin) with
      row  = (ry*2 + rx)*Cout + co    (output-pixel parity, output channel)
      col  = sx*Cin + ci              (horizontal tap within the sy group, input channel)
    so that out[2a+ry, 2b+rx, co] = sum_sy sum_{sx,ci} wg[sy, row, col] * xpad[ci, a+sy, b+sx].
    Taps falling outside the 4x4 transpose-conv kernel are zero.
    """
    cin, cout, k, k2 = w_ct.shape
    assert k == 4 and k2 == 4, "parity decomposition assumes kernel_size == 4"
    wm = jnp.zeros((2, 2, cout, 3, 3, cin), w_ct.dtype)
    for ry in range(2):
        for rx in range(2):
            for sy in range(3):
                ky = 3 + ry - 2 * sy
                if not 0 <= ky <= 3:
                    continue
                for sx in range(3):
                    kx = 3 + rx - 2 * sx
                    if not 0 <= kx <= 3:
                        continue
                    wm = wm.at[ry, rx, :, sy, sx, :].set(w_ct[:, :, ky, kx].T)
    # (ry, rx, co, sy, sx, ci) -> (sy, ry, rx, co, sx, ci) -> (3, 4*Cout, 3*Cin)
    return jnp.transpose(wm, (3, 0, 1, 2, 4, 5)).reshape(3, 4 * cout, 3 * cin)


def _deconv_kernel(w_ref, win_ref, o_ref, rhs_ref, *, cin, wpp, lj):
    """One (batch, row-tile) grid step.

    w_ref:   (3, 4*Cout, 3*Cin)   per-sy fused parity weight (VMEM resident across the grid)
    win_ref: (1, 1, Cin, WLEN)    pre-flattened lane-dense padded-input window (TR+2 rows)
    o_ref:   (1, 1, 4*Cout, LJ)   lane-dense (128-aligned) output slab for this tile
    rhs_ref: (3*Cin, LJ)          VMEM scratch holding one sy group's 3 shifted taps
    """
    for sy in range(3):
        # The 3 sx taps of this sy group are static lane shifts of the flat window; the
        # 9x "patches" buffer of v2 is never materialized.
        for sx in range(3):
            off = sy * wpp + sx
            rhs_ref[sx * cin:(sx + 1) * cin, :] = win_ref[0, 0, :, off:off + lj]
        contrib = jnp.dot(w_ref[sy], rhs_ref[...], preferred_element_type=jnp.float32)
        if sy == 0:
            o_ref[0, 0] = contrib
        else:
            o_ref[0, 0] += contrib        # f32 output block doubles as the accumulator


def _round_up(x, m):
    return -(-x // m) * m


def _vmem_budget():
    """(vmem_limit_bytes, tile-selection budget) derived from the actual chip."""
    try:
        cap = int(pltpu.get_tpu_info().vmem_capacity_bytes)
    except Exception:  # conservative fallback if the query is unavailable
        cap = 128 * 1024 * 1024
    limit = (cap * 3) // 4          # ~48 MiB on v7x (64 MiB VMEM), ~96 MiB on v5e/v6e
    budget = (limit * 4) // 5       # leave headroom for Mosaic-internal scratch
    return limit, budget


def _tile_geometry(tr, w):
    """Lane pitch / output-lane width / flat-window length for a TR-row tile."""
    quant = 128 // math.gcd(tr, 128)
    wpp = _round_up(w + 2, quant)          # per-input-row lane pitch; TR*Wpp % 128 == 0
    lj = tr * wpp                          # output lanes per tile (128-aligned)
    wlen = _round_up((tr + 2) * wpp + 2, 128)
    return wpp, lj, wlen


def _working_set_bytes(tr, w, cin, cout, itemsize):
    wpp, lj, wlen = _tile_geometry(tr, w)
    win_b = cin * wlen * itemsize
    out_b = 4 * cout * lj * 4
    rhs_b = 3 * cin * lj * itemsize
    wgt_b = 3 * 4 * cout * 3 * cin * itemsize
    # double-buffered input window + output block, plus resident weight and scratch
    return 2 * win_b + 2 * out_b + rhs_b + wgt_b


def _choose_row_tile(n, h, w, cin, cout, itemsize, budget):
    """Largest row tile (dividing H) whose double-buffered working set fits the budget."""
    divisors = sorted((d for d in range(1, h + 1) if h % d == 0), reverse=True)
    fitting = [d for d in divisors
               if _working_set_bytes(d, w, cin, cout, itemsize) <= budget]
    if not fitting:
        return divisors[-1]
    for d in fitting:
        if n * (h // d) >= 2:      # keep >=2 grid steps so both v7x TensorCores get work
            return d
    return fitting[0]


def fixed_deconv(x_nchw, w_ct, *, stride=2, padding=1):
    """ConvTranspose2d(x, w_ct) with kernel_size=4, stride=2, padding=1, bias=False.

    x_nchw: (N, Cin, H, W);  w_ct: (Cin, Cout, 4, 4) (PyTorch ConvTranspose2d layout).
    Returns (N, Cout, 2H, 2W), float32.
    """
    n, cin, h, w = x_nchw.shape
    cin_w, cout, k, _ = w_ct.shape
    assert cin_w == cin
    # TODO(synk): the sub-pixel decomposition below is specialised to k=4, s=2, p=1 (the
    # FixedDeconv configuration); other configurations need a different parity split.
    assert k == 4 and stride == 2 and padding == 1

    # The reference module runs in float32; keep compute/output f32 so the output block can
    # be used as the accumulator.  TODO(synk): optional bf16 activation/weight path (halves
    # HBM traffic on this memory-bound kernel), needs (16,128)-tile-safe block shapes.
    x_nchw = x_nchw.astype(jnp.float32)
    w_ct = w_ct.astype(jnp.float32)
    itemsize = 4

    vmem_limit, budget = _vmem_budget()
    tr = _choose_row_tile(n, h, w, cin, cout, itemsize, budget)
    t_tiles = h // tr
    wpp, lj, wlen = _tile_geometry(tr, w)

    # ---- wrapper-side window prep (one cheap, input-sized XLA copy) ----
    # 1-px zero pad, pad width up to the lane pitch Wpp, then build per-tile flat windows:
    # TR body rows + 2 halo rows, row-major on the lane axis, zero tail to WLEN so every
    # in-kernel tap offset is a plain forward lane shift.  No in-kernel assembly, no gather.
    xp = jnp.pad(x_nchw, ((0, 0), (0, 0), (1, 1), (1, 1 + wpp - (w + 2))))   # (N,Cin,H+2,Wpp)
    body = xp[:, :, :h, :].reshape(n, cin, t_tiles, tr, wpp)
    halo = jnp.stack(
        [xp[:, :, (t + 1) * tr:(t + 1) * tr + 2, :] for t in range(t_tiles)], axis=2)
    win = jnp.concatenate([body, halo], axis=3).reshape(n, cin, t_tiles, (tr + 2) * wpp)
    win = jnp.pad(win, ((0, 0), (0, 0), (0, 0), (0, wlen - (tr + 2) * wpp)))
    win = jnp.transpose(win, (0, 2, 1, 3))                                   # (N,T,Cin,WLEN)

    w_g = _grouped_parity_weight(w_ct)                                       # (3,4*Cout,3*Cin)

    kernel = functools.partial(_deconv_kernel, cin=cin, wpp=wpp, lj=lj)
    slab = pl.pallas_call(
        kernel,
        out_shape=jax.ShapeDtypeStruct((n, t_tiles, 4 * cout, lj), jnp.float32),
        grid=(n, t_tiles),
        in_specs=[
            pl.BlockSpec((3, 4 * cout, 3 * cin), lambda b, s: (0, 0, 0)),    # resident weight
            pl.BlockSpec((1, 1, cin, wlen), lambda b, s: (b, s, 0, 0)),      # flat row-tile window
        ],
        out_specs=pl.BlockSpec((1, 1, 4 * cout, lj), lambda b, s: (b, s, 0, 0)),
        scratch_shapes=[pltpu.VMEM((3 * cin, lj), jnp.float32)],
        compiler_params=pltpu.CompilerParams(
            dimension_semantics=("parallel", "parallel"),
            vmem_limit_bytes=int(vmem_limit),
        ),
    )(w_g, win)

    # Layout plumbing: drop the padded-width garbage lanes and interleave the 2x2 output
    # parities back into NCHW.
    # TODO(synk): this transpose still re-streams the 4x-sized output through HBM; emitting
    # NCHW directly from the kernel needs a lane->sublane relayout of the matmul result
    # (output rows are folded onto lanes) and is left for a follow-up.
    slab = slab.reshape(n, t_tiles, 2, 2, cout, tr, wpp)[..., :w]   # (N,T,ry,rx,Cout,TR,W)
    out = jnp.transpose(slab, (0, 4, 1, 5, 2, 6, 3))                # (N,Cout,T,TR,ry,W,rx)
    return out.reshape(n, cout, 2 * h, 2 * w)


if __name__ == "__main__":
    N, Cin, Cout, H, W = 2, 4, 4, 16, 16
    K, stride, padding = 4, 2, 1

    key = jax.random.PRNGKey(0)
    x = jax.random.normal(key, (N, Cin, H, W), dtype=jnp.float32)
    w_ct = bilinear_convtranspose_weight(Cin, Cout, K)

    out = jax.jit(fixed_deconv)(x, w_ct)
    out = jax.block_until_ready(out)
    assert out.shape == (N, Cout, 2 * H, 2 * W), out.shape

    # Reference: ConvTranspose2d == lhs-dilated conv with the spatially flipped kernel.
    rhs = jnp.transpose(w_ct, (1, 0, 2, 3))[:, :, ::-1, ::-1]   # OIHW, flipped
    ref = lax.conv_general_dilated(
        x, rhs,
        window_strides=(1, 1),
        padding=((K - 1 - padding,) * 2, (K - 1 - padding,) * 2),
        lhs_dilation=(stride, stride),
        dimension_numbers=("NCHW", "OIHW", "NCHW"),
        precision=lax.Precision.HIGHEST,
    )
    assert jnp.allclose(out, ref, atol=2e-3, rtol=2e-3), float(jnp.max(jnp.abs(out - ref)))

    print("KERNEL_OK")
</pallas_src>

<mosaic_0001>
module attributes {stable_mosaic.version = 11 : i64} {
  func.func @_deconv_kernel(%arg0: i32, %arg1: i32, %arg2: memref<3x16x12xf32, #tpu.memory_space<vmem>>, %arg3: memref<1x1x4x512xf32, #tpu.memory_space<vmem>>, %arg4: memref<1x1x16x384xf32, #tpu.memory_space<vmem>>, %arg5: memref<12x384xf32, #tpu.memory_space<vmem>>) attributes {dimension_semantics = [#tpu.dimension_semantics<parallel>, #tpu.dimension_semantics<parallel>], iteration_bounds = array<i64: 2, 1>, scalar_prefetch = 0 : i64, scratch_operands = 1 : i64, tpu.core_type = #tpu.core_type<tc>, window_params = [{pipeline_mode = #tpu.pipeline_mode<synchronous>, transform_indices = @transform_0, window_bounds = array<i64: 3, 16, 12>}, {transform_indices = @transform_1, window_bounds = array<i64: 1, 1, 4, 512>}, {transform_indices = @transform_2, window_bounds = array<i64: 1, 1, 16, 384>}]} {
    %c0 = arith.constant 0 : index
    %c0_0 = arith.constant 0 : index
    %c0_1 = arith.constant 0 : index
    %c0_2 = arith.constant 0 : index
    %0 = vector.load %arg3[%c0, %c0_0, %c0_1, %c0_2] : memref<1x1x4x512xf32, #tpu.memory_space<vmem>>, vector<1x1x4x384xf32>
    %1 = vector.shape_cast %0 : vector<1x1x4x384xf32> to vector<4x384xf32>
    %c0_3 = arith.constant 0 : index
    %c0_4 = arith.constant 0 : index
    %2 = vector.load %arg5[%c0_3, %c0_4] : memref<12x384xf32, #tpu.memory_space<vmem>>, vector<4x384xf32>
    tpu.vector_store %arg5[%c0_3, %c0_4], %1 {strides = array<i32>} : memref<12x384xf32, #tpu.memory_space<vmem>>, vector<4x384xf32>,
    %c0_5 = arith.constant 0 : index
    %c0_6 = arith.constant 0 : index
    %c0_7 = arith.constant 0 : index
    %c1 = arith.constant 1 : index
    %3 = vector.load %arg3[%c0_5, %c0_6, %c0_7, %c1] : memref<1x1x4x512xf32, #tpu.memory_space<vmem>>, vector<1x1x4x384xf32>
    %4 = vector.shape_cast %3 : vector<1x1x4x384xf32> to vector<4x384xf32>
    %c4 = arith.constant 4 : index
    %c0_8 = arith.constant 0 : index
    %5 = vector.load %arg5[%c4, %c0_8] : memref<12x384xf32, #tpu.memory_space<vmem>>, vector<4x384xf32>
    tpu.vector_store %arg5[%c4, %c0_8], %4 {strides = array<i32>} : memref<12x384xf32, #tpu.memory_space<vmem>>, vector<4x384xf32>,
    %c0_9 = arith.constant 0 : index
    %c0_10 = arith.constant 0 : index
    %c0_11 = arith.constant 0 : index
    %c2 = arith.constant 2 : index
    %6 = vector.load %arg3[%c0_9, %c0_10, %c0_11, %c2] : memref<1x1x4x512xf32, #tpu.memory_space<vmem>>, vector<1x1x4x384xf32>
    %7 = vector.shape_cast %6 : vector<1x1x4x384xf32> to vector<4x384xf32>
    %c8 = arith.constant 8 : index
    %c0_12 = arith.constant 0 : index
    %8 = vector.load %arg5[%c8, %c0_12] : memref<12x384xf32, #tpu.memory_space<vmem>>, vector<4x384xf32>
    tpu.vector_store %arg5[%c8, %c0_12], %7 {strides = array<i32>} : memref<12x384xf32, #tpu.memory_space<vmem>>, vector<4x384xf32>,
    %c0_13 = arith.constant 0 : index
    %c0_14 = arith.constant 0 : index
    %c0_15 = arith.constant 0 : index
    %9 = vector.load %arg2[%c0_13, %c0_14, %c0_15] : memref<3x16x12xf32, #tpu.memory_space<vmem>>, vector<1x16x12xf32>
    %10 = vector.shape_cast %9 : vector<1x16x12xf32> to vector<16x12xf32>
    %c0_16 = arith.constant 0 : index
    %c0_17 = arith.constant 0 : index
    %11 = vector.load %arg5[%c0_16, %c0_17] : memref<12x384xf32, #tpu.memory_space<vmem>>, vector<12x384xf32>
    %cst = arith.constant dense<0.000000e+00> : vector<16x384xf32>
    %12 = tpu.matmul %10, %11, %cst {dimension_numbers = #tpu.dot_dimension_numbers<[1], [0], [0], [1], [0, 0, 1, 1], [], []>} : vector<16x12xf32>, vector<12x384xf32>, vector<16x384xf32> -> vector<16x384xf32>
    %c0_18 = arith.constant 0 : index
    %c0_19 = arith.constant 0 : index
    %c0_20 = arith.constant 0 : index
    %c0_21 = arith.constant 0 : index
    %13 = vector.load %arg4[%c0_18, %c0_19, %c0_20, %c0_21] : memref<1x1x16x384xf32, #tpu.memory_space<vmem>>, vector<1x1x16x384xf32>
    %14 = vector.shape_cast %13 : vector<1x1x16x384xf32> to vector<16x384xf32>
    %15 = vector.shape_cast %12 : vector<16x384xf32> to vector<1x1x16x384xf32>
    tpu.vector_store %arg4[%c0_18, %c0_19, %c0_20, %c0_21], %15 {strides = array<i32>} : memref<1x1x16x384xf32, #tpu.memory_space<vmem>>, vector<1x1x16x384xf32>,
    %c0_22 = arith.constant 0 : index
    %c0_23 = arith.constant 0 : index
    %c0_24 = arith.constant 0 : index
    %c24 = arith.constant 24 : index
    %16 = vector.load %arg3[%c0_22, %c0_23, %c0_24, %c24] : memref<1x1x4x512xf32, #tpu.memory_space<vmem>>, vector<1x1x4x384xf32>
    %17 = vector.shape_cast %16 : vector<1x1x4x384xf32> to vector<4x384xf32>
    %c0_25 = arith.constant 0 : index
    %c0_26 = arith.constant 0 : index
    %18 = vector.load %arg5[%c0_25, %c0_26] : memref<12x384xf32, #tpu.memory_space<vmem>>, vector<4x384xf32>
    tpu.vector_store %arg5[%c0_25, %c0_26], %17 {strides = array<i32>} : memref<12x384xf32, #tpu.memory_space<vmem>>, vector<4x384xf32>,
    %c0_27 = arith.constant 0 : index
    %c0_28 = arith.constant 0 : index
    %c0_29 = arith.constant 0 : index
    %c25 = arith.constant 25 : index
    %19 = vector.load %arg3[%c0_27, %c0_28, %c0_29, %c25] : memref<1x1x4x512xf32, #tpu.memory_space<vmem>>, vector<1x1x4x384xf32>
    %20 = vector.shape_cast %19 : vector<1x1x4x384xf32> to vector<4x384xf32>
    %c4_30 = arith.constant 4 : index
    %c0_31 = arith.constant 0 : index
    %21 = vector.load %arg5[%c4_30, %c0_31] : memref<12x384xf32, #tpu.memory_space<vmem>>, vector<4x384xf32>
    tpu.vector_store %arg5[%c4_30, %c0_31], %20 {strides = array<i32>} : memref<12x384xf32, #tpu.memory_space<vmem>>, vector<4x384xf32>,
    %c0_32 = arith.constant 0 : index
    %c0_33 = arith.constant 0 : index
    %c0_34 = arith.constant 0 : index
    %c26 = arith.constant 26 : index
    %22 = vector.load %arg3[%c0_32, %c0_33, %c0_34, %c26] : memref<1x1x4x512xf32, #tpu.memory_space<vmem>>, vector<1x1x4x384xf32>
    %23 = vector.shape_cast %22 : vector<1x1x4x384xf32> to vector<4x384xf32>
    %c8_35 = arith.constant 8 : index
    %c0_36 = arith.constant 0 : index
    %24 = vector.load %arg5[%c8_35, %c0_36] : memref<12x384xf32, #tpu.memory_space<vmem>>, vector<4x384xf32>
    tpu.vector_store %arg5[%c8_35, %c0_36], %23 {strides = array<i32>} : memref<12x384xf32, #tpu.memory_space<vmem>>, vector<4x384xf32>,
    %c1_37 = arith.constant 1 : index
    %c0_38 = arith.constant 0 : index
    %c0_39 = arith.constant 0 : index
    %25 = vector.load %arg2[%c1_37, %c0_38, %c0_39] : memref<3x16x12xf32, #tpu.memory_space<vmem>>, vector<1x16x12xf32>
    %26 = vector.shape_cast %25 : vector<1x16x12xf32> to vector<16x12xf32>
    %c0_40 = arith.constant 0 : index
    %c0_41 = arith.constant 0 : index
    %27 = vector.load %arg5[%c0_40, %c0_41] : memref<12x384xf32, #tpu.memory_space<vmem>>, vector<12x384xf32>
    %cst_42 = arith.constant dense<0.000000e+00> : vector<16x384xf32>
    %28 = tpu.matmul %26, %27, %cst_42 {dimension_numbers = #tpu.dot_dimension_numbers<[1], [0], [0], [1], [0, 0, 1, 1], [], []>} : vector<16x12xf32>, vector<12x384xf32>, vector<16x384xf32> -> vector<16x384xf32>
    %c0_43 = arith.constant 0 : index
    %c0_44 = arith.constant 0 : index
    %c0_45 = arith.constant 0 : index
    %c0_46 = arith.constant 0 : index
    %29 = vector.load %arg4[%c0_43, %c0_44, %c0_45, %c0_46] : memref<1x1x16x384xf32, #tpu.memory_space<vmem>>, vector<1x1x16x384xf32>
    %30 = vector.shape_cast %29 : vector<1x1x16x384xf32> to vector<16x384xf32>
    %31 = arith.addf %30, %28 : vector<16x384xf32>
    %c0_47 = arith.constant 0 : index
    %c0_48 = arith.constant 0 : index
    %c0_49 = arith.constant 0 : index
    %c0_50 = arith.constant 0 : index
    %32 = vector.load %arg4[%c0_47, %c0_48, %c0_49, %c0_50] : memref<1x1x16x384xf32, #tpu.memory_space<vmem>>, vector<1x1x16x384xf32>
    %33 = vector.shape_cast %32 : vector<1x1x16x384xf32> to vector<16x384xf32>
    %34 = vector.shape_cast %31 : vector<16x384xf32> to vector<1x1x16x384xf32>
    tpu.vector_store %arg4[%c0_47, %c0_48, %c0_49, %c0_50], %34 {strides = array<i32>} : memref<1x1x16x384xf32, #tpu.memory_space<vmem>>, vector<1x1x16x384xf32>,
    %c0_51 = arith.constant 0 : index
    %c0_52 = arith.constant 0 : index
    %c0_53 = arith.constant 0 : index
    %c48 = arith.constant 48 : index
    %35 = vector.load %arg3[%c0_51, %c0_52, %c0_53, %c48] : memref<1x1x4x512xf32, #tpu.memory_space<vmem>>, vector<1x1x4x384xf32>
    %36 = vector.shape_cast %35 : vector<1x1x4x384xf32> to vector<4x384xf32>
    %c0_54 = arith.constant 0 : index
    %c0_55 = arith.constant 0 : index
    %37 = vector.load %arg5[%c0_54, %c0_55] : memref<12x384xf32, #tpu.memory_space<vmem>>, vector<4x384xf32>
    tpu.vector_store %arg5[%c0_54, %c0_55], %36 {strides = array<i32>} : memref<12x384xf32, #tpu.memory_space<vmem>>, vector<4x384xf32>,
    %c0_56 = arith.constant 0 : index
    %c0_57 = arith.constant 0 : index
    %c0_58 = arith.constant 0 : index
    %c49 = arith.constant 49 : index
    %38 = vector.load %arg3[%c0_56, %c0_57, %c0_58, %c49] : memref<1x1x4x512xf32, #tpu.memory_space<vmem>>, vector<1x1x4x384xf32>
    %39 = vector.shape_cast %38 : vector<1x1x4x384xf32> to vector<4x384xf32>
    %c4_59 = arith.constant 4 : index
    %c0_60 = arith.constant 0 : index
    %40 = vector.load %arg5[%c4_59, %c0_60] : memref<12x384xf32, #tpu.memory_space<vmem>>, vector<4x384xf32>
    tpu.vector_store %arg5[%c4_59, %c0_60], %39 {strides = array<i32>} : memref<12x384xf32, #tpu.memory_space<vmem>>, vector<4x384xf32>,
    %c0_61 = arith.constant 0 : index
    %c0_62 = arith.constant 0 : index
    %c0_63 = arith.constant 0 : index
    %c50 = arith.constant 50 : index
    %41 = vector.load %arg3[%c0_61, %c0_62, %c0_63, %c50] : memref<1x1x4x512xf32, #tpu.memory_space<vmem>>, vector<1x1x4x384xf32>
    %42 = vector.shape_cast %41 : vector<1x1x4x384xf32> to vector<4x384xf32>
    %c8_64 = arith.constant 8 : index
    %c0_65 = arith.constant 0 : index
    %43 = vector.load %arg5[%c8_64, %c0_65] : memref<12x384xf32, #tpu.memory_space<vmem>>, vector<4x384xf32>
    tpu.vector_store %arg5[%c8_64, %c0_65], %42 {strides = array<i32>} : memref<12x384xf32, #tpu.memory_space<vmem>>, vector<4x384xf32>,
    %c2_66 = arith.constant 2 : index
    %c0_67 = arith.constant 0 : index
    %c0_68 = arith.constant 0 : index
    %44 = vector.load %arg2[%c2_66, %c0_67, %c0_68] : memref<3x16x12xf32, #tpu.memory_space<vmem>>, vector<1x16x12xf32>
    %45 = vector.shape_cast %44 : vector<1x16x12xf32> to vector<16x12xf32>
    %c0_69 = arith.constant 0 : index
    %c0_70 = arith.constant 0 : index
    %46 = vector.load %arg5[%c0_69, %c0_70] : memref<12x384xf32, #tpu.memory_space<vmem>>, vector<12x384xf32>
    %cst_71 = arith.constant dense<0.000000e+00> : vector<16x384xf32>
    %47 = tpu.matmul %45, %46, %cst_71 {dimension_numbers = #tpu.dot_dimension_numbers<[1], [0], [0], [1], [0, 0, 1, 1], [], []>} : vector<16x12xf32>, vector<12x384xf32>, vector<16x384xf32> -> vector<16x384xf32>
    %c0_72 = arith.constant 0 : index
    %c0_73 = arith.constant 0 : index
    %c0_74 = arith.constant 0 : index
    %c0_75 = arith.constant 0 : index
    %48 = vector.load %arg4[%c0_72, %c0_73, %c0_74, %c0_75] : memref<1x1x16x384xf32, #tpu.memory_space<vmem>>, vector<1x1x16x384xf32>
    %49 = vector.shape_cast %48 : vector<1x1x16x384xf32> to vector<16x384xf32>
    %50 = arith.addf %49, %47 : vector<16x384xf32>
    %c0_76 = arith.constant 0 : index
    %c0_77 = arith.constant 0 : index
    %c0_78 = arith.constant 0 : index
    %c0_79 = arith.constant 0 : index
    %51 = vector.load %arg4[%c0_76, %c0_77, %c0_78, %c0_79] : memref<1x1x16x384xf32, #tpu.memory_space<vmem>>, vector<1x1x16x384xf32>
    %52 = vector.shape_cast %51 : vector<1x1x16x384xf32> to vector<16x384xf32>
    %53 = vector.shape_cast %50 : vector<16x384xf32> to vector<1x1x16x384xf32>
    tpu.vector_store %arg4[%c0_76, %c0_77, %c0_78, %c0_79], %53 {strides = array<i32>} : memref<1x1x16x384xf32, #tpu.memory_space<vmem>>, vector<1x1x16x384xf32>,
    return
  }
  func.func @transform_0(%arg0: i32, %arg1: i32) -> (i32, i32, i32) {
    %c0_i32 = arith.constant 0 : i32
    %c0_i32_0 = arith.constant 0 : i32
    %c0_i32_1 = arith.constant 0 : i32
    %c0_i32_2 = arith.constant 0 : i32
    return %c0_i32, %c0_i32_0, %c0_i32_1 : i32, i32, i32
  }
  func.func @transform_1(%arg0: i32, %arg1: i32) -> (i32, i32, i32, i32) {
    %c0_i32 = arith.constant 0 : i32
    %c0_i32_0 = arith.constant 0 : i32
    %c0_i32_1 = arith.constant 0 : i32
    return %arg0, %arg1, %c0_i32, %c0_i32_0 : i32, i32, i32, i32
  }
  func.func @transform_2(%arg0: i32, %arg1: i32) -> (i32, i32, i32, i32) {
    %c0_i32 = arith.constant 0 : i32
    %c0_i32_0 = arith.constant 0 : i32
    %c0_i32_1 = arith.constant 0 : i32
    return %arg0, %arg1, %c0_i32, %c0_i32_0 : i32, i32, i32, i32
  }
}

</mosaic_0001>

<llo_original>
// kernel: fixed_deconv.1
$region0: #{fixed_deconv.1}
  #allocation0 [shape = 'u32[]', space=smem, size = 0x4, offset = 0x4, fixed_abs, tag = 'smem constant byte address 0x4 - core index']
  #allocation1 [shape = 'u32[72,128]{1,0:T(1,128)}', space=vmem, size = 0x9000, scoped, tag = 'internal scratch']
  #allocation2 [shape = 'f32[12,384]{1,0:T(8,128)}', space=vmem, size = 0x6000, scoped, tag = 'scratch operand']
  %s0 = inlined_call_operand.vmem [shape: f32[3,16,12], index: 0, kind: input, shape index: {}]
  %s1 = inlined_call_operand.vmem [shape: f32[2,1,4,512], index: 1, kind: input, shape index: {}]
  %s2 = inlined_call_operand.vmem [shape: f32[2,1,16,384], index: 2, kind: output, shape index: {}]
  %s3 = sld [smem:[#allocation0]]
  $region41: #{fixed_deconv.1} parent=0
    _
  %s5 = ssub.s32 1, %s3
  %s6 = scalar_select 0, %s5, %s3
  loop: start=0, step=1, limit=4
  $region2: #{fixed_deconv.1} parent=0 // loop_pre_header
    _
  $region3: #{fixed_deconv.1} parent=0 // loop_header
    %s8 = sphi 0, %s12
    %p9 = scmp.ge.s32.totalorder %s8, 4
    %s15 = sphi 0, %s27
    %s16 = sphi 0, %s23
    %s17 = sphi 0, %s15
    %s18 = sphi 0, %s16
    %s19 = sphi 0, %s17
    %s20 = sphi 0, %s18
    %s28 = sphi 0, %s28
    %s30 = sphi 0, %s28
    %s31 = sphi 0, %s30
    %s45 = sphi 0, %s31
    %s53 = sphi 0, %s55
    %s56 = sphi 0, %s53
    %s57 = sphi 0, %s56
    %s73 = sphi 0, %s57
    %s81 = sphi 0, %s83
    %s84 = sphi 0, %s81
    %s85 = sphi 0, %s84
    %s101 = sphi 0, %s85
  $region4: #{fixed_deconv.1} parent=0 // loop_header_branch
    %11 = sbr.rel (%p9) target = $region8
  $region5: #{fixed_deconv.1} parent=0 // loop_body
    %s13 = ssub.s32 %s8, 1
    %s14 = ssub.s32 %s8, 2
    %s21 = sadd.s32 1, %s16
    %p22 = scmp.ge.s32.totalorder %s21, 1
    %s23 = scalar_select %p22, 0, %s21
    %s24 = sadd.s32 1, %s15
    %s25 = scalar_select %p22, %s24, %s15
    %p26 = scmp.ge.s32.totalorder %s25, 2
    %s27 = scalar_select %p26, 0, %s25
    %s29 = sadd.s32 %s28, 1
    %p32 = scmp.eq.s32.totalorder %s8, 1
    %p33 = scmp.ne.s32.totalorder %s28, %s30
    %p34 = scmp.eq.s32.totalorder %s8, 0
    %p35 = por %p33, %p34
    %p36 = scmp.ne.s32.totalorder %s28, %s30
    %p37 = scmp.eq.s32.totalorder %s13, 1
    %p38 = por %p36, %p37
    %p39 = scmp.ne.s32.totalorder %s30, %s31
    %p40 = scmp.eq.s32.totalorder %s13, 0
    %p41 = por %p39, %p40
    %p42 = scmp.ne.s32.totalorder %s30, %s31
    %p43 = scmp.eq.s32.totalorder %s14, 1
    %p44 = por %p42, %p43
    %p46 = scmp.ne.s32.totalorder %s31, %s45
    %p47 = scmp.eq.s32.totalorder %s14, 0
    %p48 = por %p46, %p47
    %s49 = ssub.s32 %s15, %s27
    %s50 = ssub.s32 %s16, %s23
    %s51 = sor.u32 %s49, %s50
    %p52 = scmp.eq.s32.totalorder %s51, 0
    %s54 = sadd.s32 %s53, 1
    %s55 = scalar_select %p52, %s53, %s54
    %p58 = pneg %p52
    %p59 = scmp.eq.s32.totalorder %s8, 1
    %p60 = por %p58, %p59
    %p61 = scmp.ne.s32.totalorder %s53, %s56
    %p62 = scmp.eq.s32.totalorder %s8, 0
    %p63 = por %p61, %p62
    %p64 = scmp.ne.s32.totalorder %s53, %s56
    %p65 = scmp.eq.s32.totalorder %s13, 1
    %p66 = por %p64, %p65
    %p67 = scmp.ne.s32.totalorder %s56, %s57
    %p68 = scmp.eq.s32.totalorder %s13, 0
    %p69 = por %p67, %p68
    %p70 = scmp.ne.s32.totalorder %s56, %s57
    %p71 = scmp.eq.s32.totalorder %s14, 1
    %p72 = por %p70, %p71
    %p74 = scmp.ne.s32.totalorder %s57, %s73
    %p75 = scmp.eq.s32.totalorder %s14, 0
    %p76 = por %p74, %p75
    %s77 = ssub.s32 %s15, %s27
    %s78 = ssub.s32 %s16, %s23
    %s79 = sor.u32 %s77, %s78
    %p80 = scmp.eq.s32.totalorder %s79, 0
    %s82 = sadd.s32 %s81, 1
    %s83 = scalar_select %p80, %s81, %s82
    %p86 = pneg %p80
    %p87 = scmp.eq.s32.totalorder %s8, 1
    %p88 = por %p86, %p87
    %p89 = scmp.ne.s32.totalorder %s81, %s84
    %p90 = scmp.eq.s32.totalorder %s8, 0
    %p91 = por %p89, %p90
    %p92 = scmp.ne.s32.totalorder %s81, %s84
    %p93 = scmp.eq.s32.totalorder %s13, 1
    %p94 = por %p92, %p93
    %p95 = scmp.ne.s32.totalorder %s84, %s85
    %p96 = scmp.eq.s32.totalorder %s13, 0
    %p97 = por %p95, %p96
    %p98 = scmp.ne.s32.totalorder %s84, %s85
    %p99 = scmp.eq.s32.totalorder %s14, 1
    %p100 = por %p98, %p99
    %p102 = scmp.ne.s32.totalorder %s85, %s101
    %p103 = scmp.eq.s32.totalorder %s14, 0
    %p104 = por %p102, %p103
    %p105 = scmp.le.s32.totalorder 1, %s8
    %p106 = scmp.lt.s32.totalorder %s8, 3
    %p107 = pnand %p105, %p106
    %p108 = pneg %p107
    // Predicated region
    $region9: #{fixed_deconv.1} parent=5 // pred_check
      _
    $region10: #{fixed_deconv.1} parent=5 // pred_check_branch
      %110 = sbr.rel (%p107) target = $region12
    $region11: #{fixed_deconv.1} parent=5 // pred_region
      %s111 = ssub.s32 %s8, 1
      // Predicated region
      $region13: #{fixed_deconv.1} parent=11 // pred_check
        %p112 = pneg %p41
      $region14: #{fixed_deconv.1} parent=11 // pred_check_branch
        %114 = sbr.rel (%p112) target = $region16
      $region15: #{fixed_deconv.1} parent=11 // pred_region
        _
      $region16: #{fixed_deconv.1} parent=11 // pred_fallthru
        _
    $region12: #{fixed_deconv.1} parent=5 // pred_fallthru
      _
    %p115 = scmp.lt.s32.totalorder %s8, 2
    // Predicated region
    $region17: #{fixed_deconv.1} parent=5 // pred_check
      %p116 = pneg %p115
    $region18: #{fixed_deconv.1} parent=5 // pred_check_branch
      %118 = sbr.rel (%p116) target = $region20
    $region19: #{fixed_deconv.1} parent=5 // pred_region
      // Predicated region
      $region21: #{fixed_deconv.1} parent=19 // pred_check
        %p119 = pneg %p63
      $region22: #{fixed_deconv.1} parent=19 // pred_check_branch
        %121 = sbr.rel (%p119) target = $region24
      $region23: #{fixed_deconv.1} parent=19 // pred_region
        %p122 = scmp.lt.s32.totalorder %s15, 1
        %s123 = scalar_select %p122, %s15, 1
        %p124 = scmp.lt.s32.totalorder %s16, 0
        %s125 = scalar_select %p124, %s16, 0
        %s126 = smul.addr %s125, 4
        %s127 = smul.addr %s123, 4
        %s128 = sadd.s32 %s126, %s127
        %s129 = smul.addr %s128, 4
        %s130 = scalar_lea.vmem %s1, %s129
      $region24: #{fixed_deconv.1} parent=19 // pred_fallthru
        _
    $region20: #{fixed_deconv.1} parent=5 // pred_fallthru
      _
    %p131 = scmp.le.s32.totalorder 1, %s8
    %p132 = scmp.lt.s32.totalorder %s8, 3
    %p133 = pnand %p131, %p132
    %p134 = pneg %p133
    // Predicated region
    $region25: #{fixed_deconv.1} parent=5 // pred_check
      _
    $region26: #{fixed_deconv.1} parent=5 // pred_check_branch
      %136 = sbr.rel (%p133) target = $region28
    $region27: #{fixed_deconv.1} parent=5 // pred_region
      %s137 = ssub.s32 %s8, 1
      %p138 = pneg %p41
      %p139 = pneg %p38
      %p140 = scmp.lt.s32.totalorder %s17, 1
      %s141 = scalar_select %p140, %s17, 1
      %p142 = scmp.lt.s32.totalorder %s18, 0
      %s143 = scalar_select %p142, %s18, 0
      %s144 = smul.addr %s143, 4
      %s145 = smul.addr %s141, 4
      %s146 = sadd.s32 %s144, %s145
      %s147 = smul.addr %s146, 4
      %s148 = scalar_lea.vmem %s1, %s147
      %p149 = pneg %p69
      %p150 = pneg %p66
      %p151 = pneg %p97
      %p152 = pneg %p94
      %p153 = scmp.lt.s32.totalorder %s17, 1
      %s154 = scalar_select %p153, %s17, 1
      %p155 = scmp.lt.s32.totalorder %s18, 0
      %s156 = scalar_select %p155, %s18, 0
      %s157 = smul.addr %s156, 6
      %s158 = smul.addr %s154, 6
      %s159 = sadd.s32 %s157, %s158
      %s160 = smul.addr %s159, 8
      %s161 = scalar_lea.vmem %s2, %s160
      %p162 = scmp.lt.s32.totalorder %s17, 1
      %s163 = scalar_select %p162, %s17, 1
      %p164 = scmp.lt.s32.totalorder %s18, 0
      %s165 = scalar_select %p164, %s18, 0
      %s166 = smul.addr %s165, 4
      %s167 = smul.addr %s163, 4
      %s168 = sadd.s32 %s166, %s167
      %s169 = smul.addr %s168, 4
      %s170 = scalar_lea.vmem %s1, %s169
      %p171 = scmp.lt.s32.totalorder %s17, 1
      %s172 = scalar_select %p171, %s17, 1
      %p173 = scmp.lt.s32.totalorder %s18, 0
      %s174 = scalar_select %p173, %s18, 0
      %s175 = smul.addr %s174, 6
      %s176 = smul.addr %s172, 6
      %s177 = sadd.s32 %s175, %s176
      %s178 = smul.addr %s177, 8
      %s179 = scalar_lea.vmem %s2, %s178
      %v180 = vld [vmem:[%s170] sm:$0xff]
      %v181 = vld [vmem:[%s170 + $0x8] sm:$0xf]
      %184 = vst [vmem:[#allocation1] ss:$2 sm:$0xff] %v180
      %s185 = scalar_lea.vmem [#allocation1], 16
      %186 = vst [vmem:[%s185] ss:$2 sm:$0xff] %v181
      %v187 = vld.sshfl [vmem:[#allocation1] sm:$0xff pattern:$0x75316420]
      %v188 = vld.sshfl [vmem:[#allocation1 + $0x8] sm:$0xff pattern:$0x75316420]
      %v189 = vld.sshfl [vmem:[#allocation1 + $0x10] sm:$0xff pattern:$0x75316420]
      %193 = vst [vmem:[#allocation2] sm:$0xf] %v187
      %194 = vst [vmem:[#allocation2 + $0x8] sm:$0xf] %v188
      %195 = vst [vmem:[#allocation2 + $0x10] sm:$0xf] %v189
      %v196 = vld [vmem:[%s170] sm:$0xff]
      %v197 = vld [vmem:[%s170 + $0x8] sm:$0xff]
      %s200 = scalar_lea.vmem [#allocation1], 1
      %201 = vst [vmem:[%s200] ss:$2 sm:$0xff] %v196
      %s202 = scalar_lea.vmem [#allocation1], 17
      %203 = vst [vmem:[%s202] ss:$2 sm:$0xff] %v197
      %v204 = vld.sshfl [vmem:[#allocation1] sm:$0xff pattern:$0x75316420]
      %v205 = vld.sshfl [vmem:[#allocation1 + $0x8] sm:$0xff pattern:$0x75316420]
      %v206 = vld.sshfl [vmem:[#allocation1 + $0x10] sm:$0xff pattern:$0x75316420]
      %v207 = vld.sshfl [vmem:[#allocation1 + $0x18] sm:$0xff pattern:$0x75316420]
      %208 = vrot.lane.b32.xlu0 %v204, 127
      %v209 = vpop.permute.xlu0 %208
      %210 = vrot.lane.b32.xlu0 %v205, 127
      %v211 = vpop.permute.xlu0 %210
      %212 = vrot.lane.b32.xlu0 %v206, 127
      %v213 = vpop.permute.xlu0 %212
      %214 = vrot.lane.b32.xlu0 %v207, 127
      %v215 = vpop.permute.xlu0 %214
      %vm216 = vcmask 1039360
      %v217 = vsel %vm216, %v209, %v211
      %v218 = vsel %vm216, %v211, %v213
      %v219 = vsel %vm216, %v213, %v215
      %223 = vst [vmem:[#allocation2] sm:$0xf0] %v217
      %224 = vst [vmem:[#allocation2 + $0x8] sm:$0xf0] %v218
      %225 = vst [vmem:[#allocation2 + $0x10] sm:$0xf0] %v219
      %v226 = vld [vmem:[%s170] sm:$0xff]
      %v227 = vld [vmem:[%s170 + $0x8] sm:$0xff]
      %230 = vst [vmem:[#allocation1] ss:$2 sm:$0xff] %v226
      %s231 = scalar_lea.vmem [#allocation1], 16
      %232 = vst [vmem:[%s231] ss:$2 sm:$0xff] %v227
      %v233 = vld.sshfl [vmem:[#allocation1] sm:$0xff pattern:$0x75316420]
      %v234 = vld.sshfl [vmem:[#allocation1 + $0x8] sm:$0xff pattern:$0x75316420]
      %v235 = vld.sshfl [vmem:[#allocation1 + $0x10] sm:$0xff pattern:$0x75316420]
      %v236 = vld.sshfl [vmem:[#allocation1 + $0x18] sm:$0xff pattern:$0x75316420]
      %237 = vrot.lane.b32.xlu0 %v233, 126
      %v238 = vpop.permute.xlu0 %237
      %239 = vrot.lane.b32.xlu0 %v234, 126
      %v240 = vpop.permute.xlu0 %239
      %241 = vrot.lane.b32.xlu0 %v235, 126
      %v242 = vpop.permute.xlu0 %241
      %243 = vrot.lane.b32.xlu0 %v236, 126
      %v244 = vpop.permute.xlu0 %243
      %vm245 = vcmask 1031168
      %v246 = vsel %vm245, %v238, %v240
      %v247 = vsel %vm245, %v240, %v242
      %v248 = vsel %vm245, %v242, %v244
      %252 = vst [vmem:[#allocation2 + $0x18] sm:$0xf] %v246
      %253 = vst [vmem:[#allocation2 + $0x20] sm:$0xf] %v247
      %254 = vst [vmem:[#allocation2 + $0x28] sm:$0xf] %v248
      %v255 = vld [vmem:[%s0] sm:$0xff]
      %v256 = vld [vmem:[%s0 + $0x8] sm:$0xff]
      %v257 = vld [vmem:[#allocation2] sm:$0xff]
      %v258 = vld [vmem:[#allocation2 + $0x8] sm:$0xff]
      %v259 = vld [vmem:[#allocation2 + $0x10] sm:$0xff]
      %v260 = vld [vmem:[#allocation2 + $0x18] sm:$0xf]
      %v261 = vld [vmem:[#allocation2 + $0x20] sm:$0xf]
      %v262 = vld [vmem:[#allocation2 + $0x28] sm:$0xf]
      %vm263 = vcmask 97280
      %v265 = vsel %vm263, %v255, 0
      %v268 = vsel %vm263, %v256, 0
      %vm270 = vcmask 1043456
      %v272 = vsel %vm270, %v260, 0
      %v275 = vsel %vm270, %v261, 0
      %v278 = vsel %vm270, %v262, 0
      %280 = vmatpush.msra.mxu0 0.0
      %281 = vmatpush.msra.mxu0 0.0
      %282 = vmatpush.msra.mxu0 0.0
      %283 = vmatpush.msra.mxu0 0.0
      %284 = vmatpush.msra.mxu0 0.0
      %285 = vmatpush.msra.mxu0 0.0
      %286 = vmatpush.msra.mxu0 0.0
      %287 = vmatpush.msra.mxu0 0.0
      %288 = vmatpush.msra.mxu0 0.0
      %289 = vmatpush.msra.mxu0 0.0
      %290 = vmatpush.msra.mxu0 0.0
      %291 = vmatpush.msra.mxu0 0.0
      %292 = vmatpush.msra.mxu0 0.0
      %293 = vmatpush.msra.mxu0 0.0
      %294 = vmatpush.msra.mxu0 %v272
      %295 = vmatpush.msra.mxu0 %v257
      %296 = vmatmul.f32.gmra.mxu0 %v265
      %v297 = vpop.f32.mrf.mxu0
      %v298 = vadd.f32 0.0, %v297
      %299 = vmatmul.f32.gmra.mxu0 %v268
      %v300 = vpop.f32.mrf.mxu0
      %v301 = vadd.f32 0.0, %v300
      %302 = vdwg.mxu0
      %303 = vmatpush.msra.mxu0 0.0
      %304 = vmatpush.msra.mxu0 0.0
      %305 = vmatpush.msra.mxu0 0.0
      %306 = vmatpush.msra.mxu0 0.0
      %307 = vmatpush.msra.mxu0 0.0
      %308 = vmatpush.msra.mxu0 0.0
      %309 = vmatpush.msra.mxu0 0.0
      %310 = vmatpush.msra.mxu0 0.0
      %311 = vmatpush.msra.mxu0 0.0
      %312 = vmatpush.msra.mxu0 0.0
      %313 = vmatpush.msra.mxu0 0.0
      %314 = vmatpush.msra.mxu0 0.0
      %315 = vmatpush.msra.mxu0 0.0
      %316 = vmatpush.msra.mxu0 0.0
      %317 = vmatpush.msra.mxu0 %v275
      %318 = vmatpush.msra.mxu0 %v258
      %319 = vmatmul.f32.gmra.mxu0 %v265
      %v320 = vpop.f32.mrf.mxu0
      %v321 = vadd.f32 0.0, %v320
      %322 = vmatmul.f32.gmra.mxu0 %v268
      %v323 = vpop.f32.mrf.mxu0
      %v324 = vadd.f32 0.0, %v323
      %325 = vdwg.mxu0
      %326 = vmatpush.msra.mxu0 0.0
      %327 = vmatpush.msra.mxu0 0.0
      %328 = vmatpush.msra.mxu0 0.0
      %329 = vmatpush.msra.mxu0 0.0
      %330 = vmatpush.msra.mxu0 0.0
      %331 = vmatpush.msra.mxu0 0.0
      %332 = vmatpush.msra.mxu0 0.0
      %333 = vmatpush.msra.mxu0 0.0
      %334 = vmatpush.msra.mxu0 0.0
      %335 = vmatpush.msra.mxu0 0.0
      %336 = vmatpush.msra.mxu0 0.0
      %337 = vmatpush.msra.mxu0 0.0
      %338 = vmatpush.msra.mxu0 0.0
      %339 = vmatpush.msra.mxu0 0.0
      %340 = vmatpush.msra.mxu0 %v278
      %341 = vmatpush.msra.mxu0 %v259
      %342 = vmatmul.f32.gmra.mxu0 %v265
      %v343 = vpop.f32.mrf.mxu0
      %v344 = vadd.f32 0.0, %v343
      %345 = vmatmul.f32.gmra.mxu0 %v268
      %v346 = vpop.f32.mrf.mxu0
      %v347 = vadd.f32 0.0, %v346
      %348 = vdwg.mxu0
      %349 = vst [vmem:[%s179] sm:$0xff] %v298
      %350 = vst [vmem:[%s179 + $0x8] sm:$0xff] %v321
      %351 = vst [vmem:[%s179 + $0x10] sm:$0xff] %v344
      %352 = vst [vmem:[%s179 + $0x18] sm:$0xff] %v301
      %353 = vst [vmem:[%s179 + $0x20] sm:$0xff] %v324
      %354 = vst [vmem:[%s179 + $0x28] sm:$0xff] %v347
      %v355 = vld [vmem:[%s170] sm:$0xff]
      %v356 = vld [vmem:[%s170 + $0x8] sm:$0xff]
      %359 = vst [vmem:[#allocation1] ss:$2 sm:$0xff] %v355
      %s360 = scalar_lea.vmem [#allocation1], 16
      %361 = vst [vmem:[%s360] ss:$2 sm:$0xff] %v356
      %v362 = vld.sshfl [vmem:[#allocation1] sm:$0xff pattern:$0x75316420]
      %v363 = vld.sshfl [vmem:[#allocation1 + $0x8] sm:$0xff pattern:$0x75316420]
      %v364 = vld.sshfl [vmem:[#allocation1 + $0x10] sm:$0xff pattern:$0x75316420]
      %v365 = vld.sshfl [vmem:[#allocation1 + $0x18] sm:$0xff pattern:$0x75316420]
      %366 = vrot.lane.b32.xlu0 %v362, 104
      %v367 = vpop.permute.xlu0 %366
      %368 = vrot.lane.b32.xlu0 %v363, 104
      %v369 = vpop.permute.xlu0 %368
      %370 = vrot.lane.b32.xlu0 %v364, 104
      %v371 = vpop.permute.xlu0 %370
      %372 = vrot.lane.b32.xlu0 %v365, 104
      %v373 = vpop.permute.xlu0 %372
      %vm374 = vcmask 850944
      %v375 = vsel %vm374, %v367, %v369
      %v376 = vsel %vm374, %v369, %v371
      %v377 = vsel %vm374, %v371, %v373
      %381 = vst [vmem:[#allocation2] sm:$0xf] %v375
      %382 = vst [vmem:[#allocation2 + $0x8] sm:$0xf] %v376
      %383 = vst [vmem:[#allocation2 + $0x10] sm:$0xf] %v377
      %v384 = vld [vmem:[%s170] sm:$0xff]
      %v385 = vld [vmem:[%s170 + $0x8] sm:$0xff]
      %s388 = scalar_lea.vmem [#allocation1], 1
      %389 = vst [vmem:[%s388] ss:$2 sm:$0xff] %v384
      %s390 = scalar_lea.vmem [#allocation1], 17
      %391 = vst [vmem:[%s390] ss:$2 sm:$0xff] %v385
      %v392 = vld.sshfl [vmem:[#allocation1] sm:$0xff pattern:$0x75316420]
      %v393 = vld.sshfl [vmem:[#allocation1 + $0x8] sm:$0xff pattern:$0x75316420]
      %v394 = vld.sshfl [vmem:[#allocation1 + $0x10] sm:$0xff pattern:$0x75316420]
      %v395 = vld.sshfl [vmem:[#allocation1 + $0x18] sm:$0xff pattern:$0x75316420]
      %396 = vrot.lane.b32.xlu0 %v392, 103
      %v397 = vpop.permute.xlu0 %396
      %398 = vrot.lane.b32.xlu0 %v393, 103
      %v399 = vpop.permute.xlu0 %398
      %400 = vrot.lane.b32.xlu0 %v394, 103
      %v401 = vpop.permute.xlu0 %400
      %402 = vrot.lane.b32.xlu0 %v395, 103
      %v403 = vpop.permute.xlu0 %402
      %vm404 = vcmask 842752
      %v405 = vsel %vm404, %v397, %v399
      %v406 = vsel %vm404, %v399, %v401
      %v407 = vsel %vm404, %v401, %v403
      %411 = vst [vmem:[#allocation2] sm:$0xf0] %v405
      %412 = vst [vmem:[#allocation2 + $0x8] sm:$0xf0] %v406
      %413 = vst [vmem:[#allocation2 + $0x10] sm:$0xf0] %v407
      %v414 = vld [vmem:[%s170] sm:$0xff]
      %v415 = vld [vmem:[%s170 + $0x8] sm:$0xff]
      %418 = vst [vmem:[#allocation1] ss:$2 sm:$0xff] %v414
      %s419 = scalar_lea.vmem [#allocation1], 16
      %420 = vst [vmem:[%s419] ss:$2 sm:$0xff] %v415
      %v421 = vld.sshfl [vmem:[#allocation1] sm:$0xff pattern:$0x75316420]
      %v422 = vld.sshfl [vmem:[#allocation1 + $0x8] sm:$0xff pattern:$0x75316420]
      %v423 = vld.sshfl [vmem:[#allocation1 + $0x10] sm:$0xff pattern:$0x75316420]
      %v424 = vld.sshfl [vmem:[#allocation1 + $0x18] sm:$0xff pattern:$0x75316420]
      %425 = vrot.lane.b32.xlu0 %v421, 102
      %v426 = vpop.permute.xlu0 %425
      %427 = vrot.lane.b32.xlu0 %v422, 102
      %v428 = vpop.permute.xlu0 %427
      %429 = vrot.lane.b32.xlu0 %v423, 102
      %v430 = vpop.permute.xlu0 %429
      %431 = vrot.lane.b32.xlu0 %v424, 102
      %v432 = vpop.permute.xlu0 %431
      %vm433 = vcmask 834560
      %v434 = vsel %vm433, %v426, %v428
      %v435 = vsel %vm433, %v428, %v430
      %v436 = vsel %vm433, %v430, %v432
      %440 = vst [vmem:[#allocation2 + $0x18] sm:$0xf] %v434
      %441 = vst [vmem:[#allocation2 + $0x20] sm:$0xf] %v435
      %442 = vst [vmem:[#allocation2 + $0x28] sm:$0xf] %v436
      %s443 = scalar_lea.vmem %s0, 16
      %v444 = vld [vmem:[%s443] sm:$0xff]
      %v445 = vld [vmem:[%s443 + $0x8] sm:$0xff]
      %v446 = vld [vmem:[#allocation2] sm:$0xff]
      %v447 = vld [vmem:[#allocation2 + $0x8] sm:$0xff]
      %v448 = vld [vmem:[#allocation2 + $0x10] sm:$0xff]
      %v449 = vld [vmem:[#allocation2 + $0x18] sm:$0xf]
      %v450 = vld [vmem:[#allocation2 + $0x20] sm:$0xf]
      %v451 = vld [vmem:[#allocation2 + $0x28] sm:$0xf]
      %v453 = vsel %vm263, %v444, 0
      %v456 = vsel %vm263, %v445, 0
      %v459 = vsel %vm270, %v449, 0
      %v462 = vsel %vm270, %v450, 0
      %v465 = vsel %vm270, %v451, 0
      %467 = vmatpush.msra.mxu0 0.0
      %468 = vmatpush.msra.mxu0 0.0
      %469 = vmatpush.msra.mxu0 0.0
      %470 = vmatpush.msra.mxu0 0.0
      %471 = vmatpush.msra.mxu0 0.0
      %472 = vmatpush.msra.mxu0 0.0
      %473 = vmatpush.msra.mxu0 0.0
      %474 = vmatpush.msra.mxu0 0.0
      %475 = vmatpush.msra.mxu0 0.0
      %476 = vmatpush.msra.mxu0 0.0
      %477 = vmatpush.msra.mxu0 0.0
      %478 = vmatpush.msra.mxu0 0.0
      %479 = vmatpush.msra.mxu0 0.0
      %480 = vmatpush.msra.mxu0 0.0
      %481 = vmatpush.msra.mxu0 %v459
      %482 = vmatpush.msra.mxu0 %v446
      %483 = vmatmul.f32.gmra.mxu0 %v453
      %v484 = vpop.f32.mrf.mxu0
      %v485 = vadd.f32 0.0, %v484
      %486 = vmatmul.f32.gmra.mxu0 %v456
      %v487 = vpop.f32.mrf.mxu0
      %v488 = vadd.f32 0.0, %v487
      %489 = vdwg.mxu0
      %490 = vmatpush.msra.mxu0 0.0
      %491 = vmatpush.msra.mxu0 0.0
      %492 = vmatpush.msra.mxu0 0.0
      %493 = vmatpush.msra.mxu0 0.0
      %494 = vmatpush.msra.mxu0 0.0
      %495 = vmatpush.msra.mxu0 0.0
      %496 = vmatpush.msra.mxu0 0.0
      %497 = vmatpush.msra.mxu0 0.0
      %498 = vmatpush.msra.mxu0 0.0
      %499 = vmatpush.msra.mxu0 0.0
      %500 = vmatpush.msra.mxu0 0.0
      %501 = vmatpush.msra.mxu0 0.0
      %502 = vmatpush.msra.mxu0 0.0
      %503 = vmatpush.msra.mxu0 0.0
      %504 = vmatpush.msra.mxu0 %v462
      %505 = vmatpush.msra.mxu0 %v447
      %506 = vmatmul.f32.gmra.mxu0 %v453
      %v507 = vpop.f32.mrf.mxu0
      %v508 = vadd.f32 0.0, %v507
      %509 = vmatmul.f32.gmra.mxu0 %v456
      %v510 = vpop.f32.mrf.mxu0
      %v511 = vadd.f32 0.0, %v510
      %512 = vdwg.mxu0
      %513 = vmatpush.msra.mxu0 0.0
      %514 = vmatpush.msra.mxu0 0.0
      %515 = vmatpush.msra.mxu0 0.0
      %516 = vmatpush.msra.mxu0 0.0
      %517 = vmatpush.msra.mxu0 0.0
      %518 = vmatpush.msra.mxu0 0.0
      %519 = vmatpush.msra.mxu0 0.0
      %520 = vmatpush.msra.mxu0 0.0
      %521 = vmatpush.msra.mxu0 0.0
      %522 = vmatpush.msra.mxu0 0.0
      %523 = vmatpush.msra.mxu0 0.0
      %524 = vmatpush.msra.mxu0 0.0
      %525 = vmatpush.msra.mxu0 0.0
      %526 = vmatpush.msra.mxu0 0.0
      %527 = vmatpush.msra.mxu0 %v465
      %528 = vmatpush.msra.mxu0 %v448
      %529 = vmatmul.f32.gmra.mxu0 %v453
      %v530 = vpop.f32.mrf.mxu0
      %v531 = vadd.f32 0.0, %v530
      %532 = vmatmul.f32.gmra.mxu0 %v456
      %v533 = vpop.f32.mrf.mxu0
      %v534 = vadd.f32 0.0, %v533
      %535 = vdwg.mxu0
      %v536 = vld [vmem:[%s179] sm:$0xff]
      %v537 = vld [vmem:[%s179 + $0x8] sm:$0xff]
      %v538 = vld [vmem:[%s179 + $0x10] sm:$0xff]
      %v539 = vld [vmem:[%s179 + $0x18] sm:$0xff]
      %v540 = vld [vmem:[%s179 + $0x20] sm:$0xff]
      %v541 = vld [vmem:[%s179 + $0x28] sm:$0xff]
      %v542 = vadd.f32 %v536, %v485
      %v543 = vadd.f32 %v537, %v508
      %v544 = vadd.f32 %v538, %v531
      %v545 = vadd.f32 %v539, %v488
      %v546 = vadd.f32 %v540, %v511
      %v547 = vadd.f32 %v541, %v534
      %548 = vst [vmem:[%s179] sm:$0xff] %v542
      %549 = vst [vmem:[%s179 + $0x8] sm:$0xff] %v543
      %550 = vst [vmem:[%s179 + $0x10] sm:$0xff] %v544
      %551 = vst [vmem:[%s179 + $0x18] sm:$0xff] %v545
      %552 = vst [vmem:[%s179 + $0x20] sm:$0xff] %v546
      %553 = vst [vmem:[%s179 + $0x28] sm:$0xff] %v547
      %v554 = vld [vmem:[%s170] sm:$0xff]
      %v555 = vld [vmem:[%s170 + $0x8] sm:$0xff]
      %558 = vst [vmem:[#allocation1] ss:$2 sm:$0xff] %v554
      %s559 = scalar_lea.vmem [#allocation1], 16
      %560 = vst [vmem:[%s559] ss:$2 sm:$0xff] %v555
      %v561 = vld.sshfl [vmem:[#allocation1] sm:$0xff pattern:$0x75316420]
      %v562 = vld.sshfl [vmem:[#allocation1 + $0x8] sm:$0xff pattern:$0x75316420]
      %v563 = vld.sshfl [vmem:[#allocation1 + $0x10] sm:$0xff pattern:$0x75316420]
      %v564 = vld.sshfl [vmem:[#allocation1 + $0x18] sm:$0xff pattern:$0x75316420]
      %565 = vrot.lane.b32.xlu0 %v561, 80
      %v566 = vpop.permute.xlu0 %565
      %567 = vrot.lane.b32.xlu0 %v562, 80
      %v568 = vpop.permute.xlu0 %567
      %569 = vrot.lane.b32.xlu0 %v563, 80
      %v570 = vpop.permute.xlu0 %569
      %571 = vrot.lane.b32.xlu0 %v564, 80
      %v572 = vpop.permute.xlu0 %571
      %vm573 = vcmask 654336
      %v574 = vsel %vm573, %v566, %v568
      %v575 = vsel %vm573, %v568, %v570
      %v576 = vsel %vm573, %v570, %v572
      %580 = vst [vmem:[#allocation2] sm:$0xf] %v574
      %581 = vst [vmem:[#allocation2 + $0x8] sm:$0xf] %v575
      %582 = vst [vmem:[#allocation2 + $0x10] sm:$0xf] %v576
      %v583 = vld [vmem:[%s170] sm:$0xff]
      %v584 = vld [vmem:[%s170 + $0x8] sm:$0xff]
      %s587 = scalar_lea.vmem [#allocation1], 1
      %588 = vst [vmem:[%s587] ss:$2 sm:$0xff] %v583
      %s589 = scalar_lea.vmem [#allocation1], 17
      %590 = vst [vmem:[%s589] ss:$2 sm:$0xff] %v584
      %v591 = vld.sshfl [vmem:[#allocation1] sm:$0xff pattern:$0x75316420]
      %v592 = vld.sshfl [vmem:[#allocation1 + $0x8] sm:$0xff pattern:$0x75316420]
      %v593 = vld.sshfl [vmem:[#allocation1 + $0x10] sm:$0xff pattern:$0x75316420]
      %v594 = vld.sshfl [vmem:[#allocation1 + $0x18] sm:$0xff pattern:$0x75316420]
      %595 = vrot.lane.b32.xlu0 %v591, 79
      %v596 = vpop.permute.xlu0 %595
      %597 = vrot.lane.b32.xlu0 %v592, 79
      %v598 = vpop.permute.xlu0 %597
      %599 = vrot.lane.b32.xlu0 %v593, 79
      %v600 = vpop.permute.xlu0 %599
      %601 = vrot.lane.b32.xlu0 %v594, 79
      %v602 = vpop.permute.xlu0 %601
      %vm603 = vcmask 646144
      %v604 = vsel %vm603, %v596, %v598
      %v605 = vsel %vm603, %v598, %v600
      %v606 = vsel %vm603, %v600, %v602
      %610 = vst [vmem:[#allocation2] sm:$0xf0] %v604
      %611 = vst [vmem:[#allocation2 + $0x8] sm:$0xf0] %v605
      %612 = vst [vmem:[#allocation2 + $0x10] sm:$0xf0] %v606
      %v613 = vld [vmem:[%s170] sm:$0xff]
      %v614 = vld [vmem:[%s170 + $0x8] sm:$0xff]
      %617 = vst [vmem:[#allocation1] ss:$2 sm:$0xff] %v613
      %s618 = scalar_lea.vmem [#allocation1], 16
      %619 = vst [vmem:[%s618] ss:$2 sm:$0xff] %v614
      %v620 = vld.sshfl [vmem:[#allocation1] sm:$0xff pattern:$0x75316420]
      %v621 = vld.sshfl [vmem:[#allocation1 + $0x8] sm:$0xff pattern:$0x75316420]
      %v622 = vld.sshfl [vmem:[#allocation1 + $0x10] sm:$0xff pattern:$0x75316420]
      %v623 = vld.sshfl [vmem:[#allocation1 + $0x18] sm:$0xff pattern:$0x75316420]
      %624 = vrot.lane.b32.xlu0 %v620, 78
      %v625 = vpop.permute.xlu0 %624
      %626 = vrot.lane.b32.xlu0 %v621, 78
      %v627 = vpop.permute.xlu0 %626
      %628 = vrot.lane.b32.xlu0 %v622, 78
      %v629 = vpop.permute.xlu0 %628
      %630 = vrot.lane.b32.xlu0 %v623, 78
      %v631 = vpop.permute.xlu0 %630
      %vm632 = vcmask 637952
      %v633 = vsel %vm632, %v625, %v627
      %v634 = vsel %vm632, %v627, %v629
      %v635 = vsel %vm632, %v629, %v631
      %639 = vst [vmem:[#allocation2 + $0x18] sm:$0xf] %v633
      %640 = vst [vmem:[#allocation2 + $0x20] sm:$0xf] %v634
      %641 = vst [vmem:[#allocation2 + $0x28] sm:$0xf] %v635
      %s642 = scalar_lea.vmem %s0, 32
      %v643 = vld [vmem:[%s642] sm:$0xff]
      %v644 = vld [vmem:[%s642 + $0x8] sm:$0xff]
      %v645 = vld [vmem:[#allocation2] sm:$0xff]
      %v646 = vld [vmem:[#allocation2 + $0x8] sm:$0xff]
      %v647 = vld [vmem:[#allocation2 + $0x10] sm:$0xff]
      %v648 = vld [vmem:[#allocation2 + $0x18] sm:$0xf]
      %v649 = vld [vmem:[#allocation2 + $0x20] sm:$0xf]
      %v650 = vld [vmem:[#allocation2 + $0x28] sm:$0xf]
      %v652 = vsel %vm263, %v643, 0
      %v655 = vsel %vm263, %v644, 0
      %v658 = vsel %vm270, %v648, 0
      %v661 = vsel %vm270, %v649, 0
      %v664 = vsel %vm270, %v650, 0
      %666 = vmatpush.msra.mxu0 0.0
      %667 = vmatpush.msra.mxu0 0.0
      %668 = vmatpush.msra.mxu0 0.0
      %669 = vmatpush.msra.mxu0 0.0
      %670 = vmatpush.msra.mxu0 0.0
      %671 = vmatpush.msra.mxu0 0.0
      %672 = vmatpush.msra.mxu0 0.0
      %673 = vmatpush.msra.mxu0 0.0
      %674 = vmatpush.msra.mxu0 0.0
      %675 = vmatpush.msra.mxu0 0.0
      %676 = vmatpush.msra.mxu0 0.0
      %677 = vmatpush.msra.mxu0 0.0
      %678 = vmatpush.msra.mxu0 0.0
      %679 = vmatpush.msra.mxu0 0.0
      %680 = vmatpush.msra.mxu0 %v658
      %681 = vmatpush.msra.mxu0 %v645
      %682 = vmatmul.f32.gmra.mxu0 %v652
      %v683 = vpop.f32.mrf.mxu0
      %v684 = vadd.f32 0.0, %v683
      %685 = vmatmul.f32.gmra.mxu0 %v655
      %v686 = vpop.f32.mrf.mxu0
      %v687 = vadd.f32 0.0, %v686
      %688 = vdwg.mxu0
      %689 = vmatpush.msra.mxu0 0.0
      %690 = vmatpush.msra.mxu0 0.0
      %691 = vmatpush.msra.mxu0 0.0
      %692 = vmatpush.msra.mxu0 0.0
      %693 = vmatpush.msra.mxu0 0.0
      %694 = vmatpush.msra.mxu0 0.0
      %695 = vmatpush.msra.mxu0 0.0
      %696 = vmatpush.msra.mxu0 0.0
      %697 = vmatpush.msra.mxu0 0.0
      %698 = vmatpush.msra.mxu0 0.0
      %699 = vmatpush.msra.mxu0 0.0
      %700 = vmatpush.msra.mxu0 0.0
      %701 = vmatpush.msra.mxu0 0.0
      %702 = vmatpush.msra.mxu0 0.0
      %703 = vmatpush.msra.mxu0 %v661
      %704 = vmatpush.msra.mxu0 %v646
      %705 = vmatmul.f32.gmra.mxu0 %v652
      %v706 = vpop.f32.mrf.mxu0
      %v707 = vadd.f32 0.0, %v706
      %708 = vmatmul.f32.gmra.mxu0 %v655
      %v709 = vpop.f32.mrf.mxu0
      %v710 = vadd.f32 0.0, %v709
      %711 = vdwg.mxu0
      %712 = vmatpush.msra.mxu0 0.0
      %713 = vmatpush.msra.mxu0 0.0
      %714 = vmatpush.msra.mxu0 0.0
      %715 = vmatpush.msra.mxu0 0.0
      %716 = vmatpush.msra.mxu0 0.0
      %717 = vmatpush.msra.mxu0 0.0
      %718 = vmatpush.msra.mxu0 0.0
      %719 = vmatpush.msra.mxu0 0.0
      %720 = vmatpush.msra.mxu0 0.0
      %721 = vmatpush.msra.mxu0 0.0
      %722 = vmatpush.msra.mxu0 0.0
      %723 = vmatpush.msra.mxu0 0.0
      %724 = vmatpush.msra.mxu0 0.0
      %725 = vmatpush.msra.mxu0 0.0
      %726 = vmatpush.msra.mxu0 %v664
      %727 = vmatpush.msra.mxu0 %v647
      %728 = vmatmul.f32.gmra.mxu0 %v652
      %v729 = vpop.f32.mrf.mxu0
      %v730 = vadd.f32 0.0, %v729
      %731 = vmatmul.f32.gmra.mxu0 %v655
      %v732 = vpop.f32.mrf.mxu0
      %v733 = vadd.f32 0.0, %v732
      %734 = vdwg.mxu0
      %v735 = vld [vmem:[%s179] sm:$0xff]
      %v736 = vld [vmem:[%s179 + $0x8] sm:$0xff]
      %v737 = vld [vmem:[%s179 + $0x10] sm:$0xff]
      %v738 = vld [vmem:[%s179 + $0x18] sm:$0xff]
      %v739 = vld [vmem:[%s179 + $0x20] sm:$0xff]
      %v740 = vld [vmem:[%s179 + $0x28] sm:$0xff]
      %v741 = vadd.f32 %v735, %v684
      %v742 = vadd.f32 %v736, %v707
      %v743 = vadd.f32 %v737, %v730
      %v744 = vadd.f32 %v738, %v687
      %v745 = vadd.f32 %v739, %v710
      %v746 = vadd.f32 %v740, %v733
      %747 = vst [vmem:[%s179] sm:$0xff] %v741
      %748 = vst [vmem:[%s179 + $0x8] sm:$0xff] %v742
      %749 = vst [vmem:[%s179 + $0x10] sm:$0xff] %v743
      %750 = vst [vmem:[%s179 + $0x18] sm:$0xff] %v744
      %751 = vst [vmem:[%s179 + $0x20] sm:$0xff] %v745
      %752 = vst [vmem:[%s179 + $0x28] sm:$0xff] %v746
      %p753 = scmp.lt.s32.totalorder %s17, 1
      %s754 = scalar_select %p753, %s17, 1
      %p755 = scmp.lt.s32.totalorder %s18, 0
      %s756 = scalar_select %p755, %s18, 0
      %s757 = smul.addr %s756, 6
      %s758 = smul.addr %s754, 6
      %s759 = sadd.s32 %s757, %s758
      %s760 = smul.addr %s759, 8
      %s761 = scalar_lea.vmem %s2, %s760
      // Predicated region
      $region29: #{fixed_deconv.1} parent=27 // pred_check
        %p762 = pneg %p94
      $region30: #{fixed_deconv.1} parent=27 // pred_check_branch
        %764 = sbr.rel (%p762) target = $region32
      $region31: #{fixed_deconv.1} parent=27 // pred_region
        _
      $region32: #{fixed_deconv.1} parent=27 // pred_fallthru
        _
    $region28: #{fixed_deconv.1} parent=5 // pred_fallthru
      _
    %p765 = scmp.le.s32.totalorder 2, %s8
    // Predicated region
    $region33: #{fixed_deconv.1} parent=5 // pred_check
      %p766 = pneg %p765
    $region34: #{fixed_deconv.1} parent=5 // pred_check_branch
      %768 = sbr.rel (%p766) target = $region36
    $region35: #{fixed_deconv.1} parent=5 // pred_region
      %s769 = ssub.s32 %s8, 2
      // Predicated region
      $region37: #{fixed_deconv.1} parent=35 // pred_check
        %p770 = pneg %p100
      $region38: #{fixed_deconv.1} parent=35 // pred_check_branch
        %772 = sbr.rel (%p770) target = $region40
      $region39: #{fixed_deconv.1} parent=35 // pred_region
        %p773 = scmp.lt.s32.totalorder %s19, 1
        %s774 = scalar_select %p773, %s19, 1
        %p775 = scmp.lt.s32.totalorder %s20, 0
        %s776 = scalar_select %p775, %s20, 0
        %s777 = smul.addr %s776, 6
        %s778 = smul.addr %s774, 6
        %s779 = sadd.s32 %s777, %s778
        %s780 = smul.addr %s779, 8
        %s781 = scalar_lea.vmem %s2, %s780
      $region40: #{fixed_deconv.1} parent=35 // pred_fallthru
        _
    $region36: #{fixed_deconv.1} parent=5 // pred_fallthru
      _
  $region6: #{fixed_deconv.1} parent=0 // loop_footer
    %s12 = sadd.s32 1, %s8
  $region7: #{fixed_deconv.1} parent=0 // loop_footer_branch
    %7 = sbr.rel target = $region3
  $region8: #{fixed_deconv.1} parent=0 // loop_exit
    _

</llo_original>
